<compile_context>
chip_gen: v6e
topology: v6e:2x2x1
jax: 0.10.0
libtpu: 0.0.40
codegen_flags: <defaults>
</compile_context>

<pallas_src>
import math

import jax
import jax.numpy as jnp
from jax.experimental import pallas as pl
from jax.experimental.pallas import tpu as pltpu


def _qnet_kernel(xT_ref, w1_ref, b1_ref, w2_ref, b2_ref, outT_ref):
    # Fused, transposed hot path (batch on lanes):
    #   h^T = relu(W1 @ x^T + b1)   [H, TB]
    #   y^T = W2 @ h^T + b2         [O, TB]
    xT = xT_ref[...]                                                    # [I_pad, TB]
    h = jnp.dot(w1_ref[...], xT, preferred_element_type=jnp.float32)   # [H, TB] f32
    h = jnp.maximum(h + b1_ref[...], 0.0)                              # bias + ReLU (VPU, f32)
    # Keep h in f32 for the second dot (avoids bf16 rounding of activations).
    y = jnp.dot(w2_ref[...], h, preferred_element_type=jnp.float32)    # [O, TB] f32
    outT_ref[...] = (y + b2_ref[...]).astype(outT_ref.dtype)


def _round_up(n, m):
    return ((n + m - 1) // m) * m


def _choose_tiling(B):
    """Return (B_pad, TB): padded batch and lane-dim batch tile.

    TB is always a multiple of 128 (lane-dense blocks).  For B > 256 the grid
    has >= 2 steps so v7x's two TensorCores both get work; TB is capped at
    2048 which keeps the double-buffered per-step working set trivially under
    every generation's VMEM budget while amortizing the ~0.35 us/step overhead.
    """
    LANE = 128
    if B <= 256:
        b_pad = _round_up(B, LANE)
        return b_pad, b_pad
    tb = min(_round_up(pl.cdiv(B, 2), LANE), 2048)
    b_pad = _round_up(B, tb)
    return b_pad, tb


def linear_qnet_forward(x, w1, b1, w2, b2):
    """Forward pass matching PyTorch Linear_QNet.

    x : [B, I]          (PyTorch-facing layout; transposed internally)
    w1: [H, I_pad]      (torch-native [out, in], in-features zero-padded to 8k)
    b1: [H, 1]
    w2: [O, H]          (torch-native [out, in])
    b2: [O, 1]
    Returns [B, O].
    """
    B, I = x.shape
    H, I_pad = w1.shape
    O = w2.shape[0]

    B_pad, TB = _choose_tiling(B)
    grid = (B_pad // TB,)

    # Pad batch + feature dims, put batch on the lane (last) axis.
    x_pad = jnp.pad(x, ((0, B_pad - B), (0, I_pad - I)))
    xT = x_pad.T                                                        # [I_pad, B_pad]

    dsize = jnp.dtype(x.dtype).itemsize
    psize = jnp.dtype(w1.dtype).itemsize
    cost = pl.CostEstimate(
        flops=2 * B_pad * (I_pad * H + H * O),
        transcendentals=0,
        bytes_accessed=(B_pad * I_pad + B_pad * O) * dsize
        + (I_pad * H + H + H * O + O) * psize,
    )

    yT = pl.pallas_call(
        _qnet_kernel,
        out_shape=jax.ShapeDtypeStruct((O, B_pad), x.dtype),
        grid_spec=pl.GridSpec(
            grid=grid,
            in_specs=[
                pl.BlockSpec((I_pad, TB), lambda i: (0, i)),  # x^T streams over batch (lanes)
                pl.BlockSpec((H, I_pad), lambda i: (0, 0)),   # weights/biases: VMEM-resident
                pl.BlockSpec((H, 1), lambda i: (0, 0)),
                pl.BlockSpec((O, H), lambda i: (0, 0)),
                pl.BlockSpec((O, 1), lambda i: (0, 0)),
            ],
            out_specs=pl.BlockSpec((O, TB), lambda i: (0, i)),  # lane-dense output slab
        ),
        compiler_params=pltpu.CompilerParams(
            dimension_semantics=("parallel",),  # shard batch grid across TCs (v7x)
        ),
        cost_estimate=cost,
    )(xT, w1, b1, w2, b2)

    return yT[:, :B].T                                                  # [B, O]


def init_params(key, input_size, hidden_size, output_size, param_dtype=jnp.float32):
    """nn.Linear-style init in kernel-native (== torch-native [out, in]) layout.

    The in-feature dim of w1 is zero-padded up to a sublane multiple (8); the
    wrapper zero-pads x identically, so results are unchanged.
    """
    i_pad = _round_up(input_size, 8)
    k1, k2, k3, k4 = jax.random.split(key, 4)
    bound1 = 1.0 / math.sqrt(input_size)
    bound2 = 1.0 / math.sqrt(hidden_size)
    w1 = jax.random.uniform(k1, (hidden_size, input_size), jnp.float32, -bound1, bound1)
    w1 = jnp.pad(w1, ((0, 0), (0, i_pad - input_size)))   # zero-filled padded in-features
    b1 = jax.random.uniform(k2, (hidden_size, 1), jnp.float32, -bound1, bound1)
    w2 = jax.random.uniform(k3, (output_size, hidden_size), jnp.float32, -bound2, bound2)
    b2 = jax.random.uniform(k4, (output_size, 1), jnp.float32, -bound2, bound2)
    return (w1.astype(param_dtype), b1, w2.astype(param_dtype), b2)


if __name__ == "__main__":
    # Typical snake Q-net sizing, kept small: input=11, hidden=32, output=3.
    batch, input_size, hidden_size, output_size = 8, 11, 32, 3

    key = jax.random.PRNGKey(0)
    kx, kp = jax.random.split(key)
    x = jax.random.normal(kx, (batch, input_size), jnp.float32)
    w1, b1, w2, b2 = init_params(kp, input_size, hidden_size, output_size)

    fwd = jax.jit(linear_qnet_forward)
    out = jax.block_until_ready(fwd(x, w1, b1, w2, b2))

    # Reference check against plain JAX (same math as the PyTorch forward).
    def ref_fn(x_):
        h = jnp.maximum(x_ @ w1[:, :input_size].T + b1[:, 0], 0.0)
        return h @ w2.T + b2[:, 0]

    ref = ref_fn(x)
    assert out.shape == (batch, output_size)
    assert jnp.allclose(out, ref, atol=1e-5, rtol=1e-5)

    # Second check: ragged batch > 256 exercises padding + multi-step grid.
    x2 = jax.random.normal(jax.random.PRNGKey(1), (300, input_size), jnp.float32)
    out2 = jax.block_until_ready(fwd(x2, w1, b1, w2, b2))
    assert out2.shape == (300, output_size)
    assert jnp.allclose(out2, ref_fn(x2), atol=1e-5, rtol=1e-5)

    print("KERNEL_OK")
</pallas_src>

<mosaic_0001>
module attributes {stable_mosaic.version = 11 : i64} {
  func.func @_qnet_kernel(%arg0: i32, %arg1: memref<16x128xf32, #tpu.memory_space<vmem>>, %arg2: memref<32x16xf32, #tpu.memory_space<vmem>>, %arg3: memref<32x1xf32, #tpu.memory_space<vmem>>, %arg4: memref<3x32xf32, #tpu.memory_space<vmem>>, %arg5: memref<3x1xf32, #tpu.memory_space<vmem>>, %arg6: memref<3x128xf32, #tpu.memory_space<vmem>>) attributes {dimension_semantics = [#tpu.dimension_semantics<parallel>], iteration_bounds = array<i64: 1>, scalar_prefetch = 0 : i64, scratch_operands = 0 : i64, tpu.core_type = #tpu.core_type<tc>, window_params = [{transform_indices = @transform_0, window_bounds = array<i64: 16, 128>}, {pipeline_mode = #tpu.pipeline_mode<synchronous>, transform_indices = @transform_1, window_bounds = array<i64: 32, 16>}, {pipeline_mode = #tpu.pipeline_mode<synchronous>, transform_indices = @transform_2, window_bounds = array<i64: 32, 1>}, {pipeline_mode = #tpu.pipeline_mode<synchronous>, transform_indices = @transform_3, window_bounds = array<i64: 3, 32>}, {pipeline_mode = #tpu.pipeline_mode<synchronous>, transform_indices = @transform_4, window_bounds = array<i64: 3, 1>}, {transform_indices = @transform_5, window_bounds = array<i64: 3, 128>}]} {
    %c0 = arith.constant 0 : index
    %c0_0 = arith.constant 0 : index
    %0 = vector.load %arg1[%c0, %c0_0] : memref<16x128xf32, #tpu.memory_space<vmem>>, vector<16x128xf32>
    %c0_1 = arith.constant 0 : index
    %c0_2 = arith.constant 0 : index
    %1 = vector.load %arg2[%c0_1, %c0_2] : memref<32x16xf32, #tpu.memory_space<vmem>>, vector<32x16xf32>
    %cst = arith.constant dense<0.000000e+00> : vector<32x128xf32>
    %2 = tpu.matmul %1, %0, %cst {dimension_numbers = #tpu.dot_dimension_numbers<[1], [0], [0], [1], [0, 0, 1, 1], [], []>} : vector<32x16xf32>, vector<16x128xf32>, vector<32x128xf32> -> vector<32x128xf32>
    %c0_3 = arith.constant 0 : index
    %c0_4 = arith.constant 0 : index
    %3 = vector.load %arg3[%c0_3, %c0_4] : memref<32x1xf32, #tpu.memory_space<vmem>>, vector<32x1xf32>
    %4 = vector.broadcast %3 : vector<32x1xf32> to vector<32x128xf32>
    %5 = arith.addf %2, %4 : vector<32x128xf32>
    %cst_5 = arith.constant 0.000000e+00 : f32
    %6 = vector.broadcast %cst_5 : f32 to vector<32x128xf32>
    %7 = arith.maximumf %5, %6 : vector<32x128xf32>
    %c0_6 = arith.constant 0 : index
    %c0_7 = arith.constant 0 : index
    %8 = vector.load %arg4[%c0_6, %c0_7] : memref<3x32xf32, #tpu.memory_space<vmem>>, vector<3x32xf32>
    %cst_8 = arith.constant dense<0.000000e+00> : vector<3x128xf32>
    %9 = tpu.matmul %8, %7, %cst_8 {dimension_numbers = #tpu.dot_dimension_numbers<[1], [0], [0], [1], [0, 0, 1, 1], [], []>} : vector<3x32xf32>, vector<32x128xf32>, vector<3x128xf32> -> vector<3x128xf32>
    %c0_9 = arith.constant 0 : index
    %c0_10 = arith.constant 0 : index
    %10 = vector.load %arg5[%c0_9, %c0_10] : memref<3x1xf32, #tpu.memory_space<vmem>>, vector<3x1xf32>
    %11 = vector.broadcast %10 : vector<3x1xf32> to vector<3x128xf32>
    %12 = arith.addf %9, %11 : vector<3x128xf32>
    %c0_11 = arith.constant 0 : index
    %c0_12 = arith.constant 0 : index
    %13 = vector.load %arg6[%c0_11, %c0_12] : memref<3x128xf32, #tpu.memory_space<vmem>>, vector<3x128xf32>
    tpu.vector_store %arg6[%c0_11, %c0_12], %12 {strides = array<i32>} : memref<3x128xf32, #tpu.memory_space<vmem>>, vector<3x128xf32>,
    return
  }
  func.func @transform_0(%arg0: i32) -> (i32, i32) {
    %c0_i32 = arith.constant 0 : i32
    %c0_i32_0 = arith.constant 0 : i32
    return %c0_i32, %arg0 : i32, i32
  }
  func.func @transform_1(%arg0: i32) -> (i32, i32) {
    %c0_i32 = arith.constant 0 : i32
    %c0_i32_0 = arith.constant 0 : i32
    %c0_i32_1 = arith.constant 0 : i32
    return %c0_i32, %c0_i32_0 : i32, i32
  }
  func.func @transform_2(%arg0: i32) -> (i32, i32) {
    %c0_i32 = arith.constant 0 : i32
    %c0_i32_0 = arith.constant 0 : i32
    %c0_i32_1 = arith.constant 0 : i32
    return %c0_i32, %c0_i32_0 : i32, i32
  }
  func.func @transform_3(%arg0: i32) -> (i32, i32) {
    %c0_i32 = arith.constant 0 : i32
    %c0_i32_0 = arith.constant 0 : i32
    %c0_i32_1 = arith.constant 0 : i32
    return %c0_i32, %c0_i32_0 : i32, i32
  }
  func.func @transform_4(%arg0: i32) -> (i32, i32) {
    %c0_i32 = arith.constant 0 : i32
    %c0_i32_0 = arith.constant 0 : i32
    %c0_i32_1 = arith.constant 0 : i32
    return %c0_i32, %c0_i32_0 : i32, i32
  }
  func.func @transform_5(%arg0: i32) -> (i32, i32) {
    %c0_i32 = arith.constant 0 : i32
    %c0_i32_0 = arith.constant 0 : i32
    return %c0_i32, %arg0 : i32, i32
  }
}

</mosaic_0001>

<llo_original>
// kernel: linear_qnet_forward.1
$region0: #{linear_qnet_forward.1}
  #allocation0 [shape = 'u32[]', space=smem, size = 0x4, offset = 0x4, fixed_abs, tag = 'smem constant byte address 0x4 - core index']
  #allocation1 [shape = 'u32[144,128]{1,0:T(1,128)}', space=vmem, size = 0x12000, scoped, tag = 'internal scratch']
  %s0 = inlined_call_operand.vmem [shape: f32[16,128], index: 0, kind: input, shape index: {}]
  %s1 = inlined_call_operand.vmem [shape: f32[32,16], index: 1, kind: input, shape index: {}]
  %s2 = inlined_call_operand.vmem [shape: f32[32,1], index: 2, kind: input, shape index: {}]
  %s3 = inlined_call_operand.vmem [shape: f32[3,32], index: 3, kind: input, shape index: {}]
  %s4 = inlined_call_operand.vmem [shape: f32[3,1], index: 4, kind: input, shape index: {}]
  %s5 = inlined_call_operand.vmem [shape: f32[3,128], index: 5, kind: output, shape index: {}]
  %s6 = sld [smem:[#allocation0]]
  $region30: #{linear_qnet_forward.1} parent=0
    _
  %s8 = ssub.s32 1, %s6
  %s9 = scalar_select 0, %s8, %s6
  // Predicated region
  $region2: #{linear_qnet_forward.1} parent=0 // pred_check
    _
  $region3: #{linear_qnet_forward.1} parent=0 // pred_check_branch
    %11 = sbr.rel (0) target = $region5
  $region4: #{linear_qnet_forward.1} parent=0 // pred_region
    _
  $region5: #{linear_qnet_forward.1} parent=0 // pred_fallthru
    _
  // Predicated region
  $region6: #{linear_qnet_forward.1} parent=0 // pred_check
    _
  $region7: #{linear_qnet_forward.1} parent=0 // pred_check_branch
    %13 = sbr.rel (0) target = $region9
  $region8: #{linear_qnet_forward.1} parent=0 // pred_region
    _
  $region9: #{linear_qnet_forward.1} parent=0 // pred_fallthru
    _
  // Predicated region
  $region10: #{linear_qnet_forward.1} parent=0 // pred_check
    _
  $region11: #{linear_qnet_forward.1} parent=0 // pred_check_branch
    %15 = sbr.rel (0) target = $region13
  $region12: #{linear_qnet_forward.1} parent=0 // pred_region
    _
  $region13: #{linear_qnet_forward.1} parent=0 // pred_fallthru
    _
  // Predicated region
  $region14: #{linear_qnet_forward.1} parent=0 // pred_check
    _
  $region15: #{linear_qnet_forward.1} parent=0 // pred_check_branch
    %17 = sbr.rel (0) target = $region17
  $region16: #{linear_qnet_forward.1} parent=0 // pred_region
    _
  $region17: #{linear_qnet_forward.1} parent=0 // pred_fallthru
    _
  // Predicated region
  $region18: #{linear_qnet_forward.1} parent=0 // pred_check
    _
  $region19: #{linear_qnet_forward.1} parent=0 // pred_check_branch
    %19 = sbr.rel (0) target = $region21
  $region20: #{linear_qnet_forward.1} parent=0 // pred_region
    _
  $region21: #{linear_qnet_forward.1} parent=0 // pred_fallthru
    _
  %v20 = vld [vmem:[%s0] sm:$0xff]
  %v21 = vld [vmem:[%s0 + $0x8] sm:$0xff]
  %v22 = vld [vmem:[%s1] sm:$0xff]
  %v23 = vld [vmem:[%s1 + $0x8] sm:$0xff]
  %v24 = vld [vmem:[%s1 + $0x10] sm:$0xff]
  %v25 = vld [vmem:[%s1 + $0x18] sm:$0xff]
  %v26 = vld [vmem:[%s2] sm:$0xff]
  %v27 = vld [vmem:[%s2 + $0x8] sm:$0xff]
  %v28 = vld [vmem:[%s2 + $0x10] sm:$0xff]
  %v29 = vld [vmem:[%s2 + $0x18] sm:$0xff]
  %31 = vset.pattern.permute.xlu0 0
  %32 = vperm.xlu0 %31, %v26
  %v33 = vpop.permute.xlu0 %32
  %36 = vset.pattern.permute.xlu0 0
  %37 = vperm.xlu0 %36, %v27
  %v38 = vpop.permute.xlu0 %37
  %41 = vset.pattern.permute.xlu0 0
  %42 = vperm.xlu0 %41, %v28
  %v43 = vpop.permute.xlu0 %42
  %46 = vset.pattern.permute.xlu0 0
  %47 = vperm.xlu0 %46, %v29
  %v48 = vpop.permute.xlu0 %47
  %vm50 = vcmask 130048
  %v52 = vsel %vm50, %v22, 0
  %v55 = vsel %vm50, %v23, 0
  %v58 = vsel %vm50, %v24, 0
  %v61 = vsel %vm50, %v25, 0
  %63 = vmatprep.subr.mxu0 0.0
  %64 = vmatpush1.msra.mxu0 0.0
  %65 = vmatprep.subr.mxu0 0.0
  %66 = vmatpush1.msra.mxu0 0.0
  %67 = vmatprep.subr.mxu0 0.0
  %68 = vmatpush1.msra.mxu0 0.0
  %69 = vmatprep.subr.mxu0 0.0
  %70 = vmatpush1.msra.mxu0 0.0
  %71 = vmatprep.subr.mxu0 0.0
  %72 = vmatpush1.msra.mxu0 0.0
  %73 = vmatprep.subr.mxu0 0.0
  %74 = vmatpush1.msra.mxu0 0.0
  %75 = vmatprep.subr.mxu0 0.0
  %76 = vmatpush1.msra.mxu0 0.0
  %77 = vmatprep.subr.mxu0 0.0
  %78 = vmatpush1.msra.mxu0 0.0
  %79 = vmatprep.subr.mxu0 0.0
  %80 = vmatpush1.msra.mxu0 0.0
  %81 = vmatprep.subr.mxu0 0.0
  %82 = vmatpush1.msra.mxu0 0.0
  %83 = vmatprep.subr.mxu0 0.0
  %84 = vmatpush1.msra.mxu0 0.0
  %85 = vmatprep.subr.mxu0 0.0
  %86 = vmatpush1.msra.mxu0 0.0
  %87 = vmatprep.subr.mxu0 0.0
  %88 = vmatpush1.msra.mxu0 0.0
  %89 = vmatprep.subr.mxu0 0.0
  %90 = vmatpush1.msra.mxu0 0.0
  %91 = vmatprep.subr.mxu0 0.0
  %92 = vmatpush1.msra.mxu0 %v21
  %93 = vmatprep.subr.mxu0 0.0
  %94 = vmatpush1.msra.mxu0 %v20
  %95 = vmatprep.subr.mxu0 0.0
  %96 = vmatpush2.msra.mxu0 0.0
  %97 = vmatprep.subr.mxu0 0.0
  %98 = vmatpush2.msra.mxu0 0.0
  %99 = vmatprep.subr.mxu0 0.0
  %100 = vmatpush2.msra.mxu0 0.0
  %101 = vmatprep.subr.mxu0 0.0
  %102 = vmatpush2.msra.mxu0 0.0
  %103 = vmatprep.subr.mxu0 0.0
  %104 = vmatpush2.msra.mxu0 0.0
  %105 = vmatprep.subr.mxu0 0.0
  %106 = vmatpush2.msra.mxu0 0.0
  %107 = vmatprep.subr.mxu0 0.0
  %108 = vmatpush2.msra.mxu0 0.0
  %109 = vmatprep.subr.mxu0 0.0
  %110 = vmatpush2.msra.mxu0 0.0
  %111 = vmatprep.subr.mxu0 0.0
  %112 = vmatpush2.msra.mxu0 0.0
  %113 = vmatprep.subr.mxu0 0.0
  %114 = vmatpush2.msra.mxu0 0.0
  %115 = vmatprep.subr.mxu0 0.0
  %116 = vmatpush2.msra.mxu0 0.0
  %117 = vmatprep.subr.mxu0 0.0
  %118 = vmatpush2.msra.mxu0 0.0
  %119 = vmatprep.subr.mxu0 0.0
  %120 = vmatpush2.msra.mxu0 0.0
  %121 = vmatprep.subr.mxu0 0.0
  %122 = vmatpush2.msra.mxu0 0.0
  %123 = vmatprep.subr.mxu0 0.0
  %124 = vmatpush2.msra.mxu0 0.0
  %125 = vmatprep.subr.mxu0 0.0
  %126 = vmatpush2.msra.mxu0 0.0
  %127 = vmatprep.mubr.f32.mxu0 0.0
  %128 = vmatmul.mubr.f32.gmra.mxu0 %v52
  %v129 = vpop.f32.mrf.mxu0
  %v130 = vadd.f32 %v33, %v129
  %v131 = vpop.f32.mrf.mxu0
  %132 = vmatprep.mubr.f32.mxu0 0.0
  %133 = vmatmul.mubr.f32.gmra.mxu0 %v55
  %v134 = vpop.f32.mrf.mxu0
  %v135 = vadd.f32 %v38, %v134
  %v136 = vpop.f32.mrf.mxu0
  %137 = vmatprep.mubr.f32.mxu0 0.0
  %138 = vmatmul.mubr.f32.gmra.mxu0 %v58
  %v139 = vpop.f32.mrf.mxu0
  %v140 = vadd.f32 %v43, %v139
  %v141 = vpop.f32.mrf.mxu0
  %142 = vmatprep.mubr.f32.mxu0 0.0
  %143 = vmatmul.mubr.f32.gmra.mxu0 %v61
  %v144 = vpop.f32.mrf.mxu0
  %v145 = vadd.f32 %v48, %v144
  %v146 = vpop.f32.mrf.mxu0
  %147 = vdwg.mxu0
  %v148 = vmax.f32 %v130, 0.0
  %v149 = vmax.f32 %v135, 0.0
  %v150 = vmax.f32 %v140, 0.0
  %v151 = vmax.f32 %v145, 0.0
  %v152 = vld [vmem:[%s3] sm:$0x7]
  %v153 = vld [vmem:[%s4] sm:$0x7]
  %155 = vset.pattern.permute.xlu0 0
  %156 = vperm.xlu0 %155, %v153
  %v157 = vpop.permute.xlu0 %156
  %vm159 = vcmask 261120
  %v161 = vsel %vm159, %v152, 0
  %163 = vmatprep.subr.mxu0 0.0
  %164 = vmatpush1.msra.mxu0 0.0
  %165 = vmatprep.subr.mxu0 0.0
  %166 = vmatpush1.msra.mxu0 0.0
  %167 = vmatprep.subr.mxu0 0.0
  %168 = vmatpush1.msra.mxu0 0.0
  %169 = vmatprep.subr.mxu0 0.0
  %170 = vmatpush1.msra.mxu0 0.0
  %171 = vmatprep.subr.mxu0 0.0
  %172 = vmatpush1.msra.mxu0 0.0
  %173 = vmatprep.subr.mxu0 0.0
  %174 = vmatpush1.msra.mxu0 0.0
  %175 = vmatprep.subr.mxu0 0.0
  %176 = vmatpush1.msra.mxu0 0.0
  %177 = vmatprep.subr.mxu0 0.0
  %178 = vmatpush1.msra.mxu0 0.0
  %179 = vmatprep.subr.mxu0 0.0
  %180 = vmatpush1.msra.mxu0 0.0
  %181 = vmatprep.subr.mxu0 0.0
  %182 = vmatpush1.msra.mxu0 0.0
  %183 = vmatprep.subr.mxu0 0.0
  %184 = vmatpush1.msra.mxu0 0.0
  %185 = vmatprep.subr.mxu0 0.0
  %186 = vmatpush1.msra.mxu0 0.0
  %187 = vmatprep.subr.mxu0 0.0
  %188 = vmatpush1.msra.mxu0 %v151
  %189 = vmatprep.subr.mxu0 0.0
  %190 = vmatpush1.msra.mxu0 %v150
  %191 = vmatprep.subr.mxu0 0.0
  %192 = vmatpush1.msra.mxu0 %v149
  %193 = vmatprep.subr.mxu0 0.0
  %194 = vmatpush1.msra.mxu0 %v148
  %195 = vmatprep.subr.mxu0 0.0
  %196 = vmatpush2.msra.mxu0 0.0
  %197 = vmatprep.subr.mxu0 0.0
  %198 = vmatpush2.msra.mxu0 0.0
  %199 = vmatprep.subr.mxu0 0.0
  %200 = vmatpush2.msra.mxu0 0.0
  %201 = vmatprep.subr.mxu0 0.0
  %202 = vmatpush2.msra.mxu0 0.0
  %203 = vmatprep.subr.mxu0 0.0
  %204 = vmatpush2.msra.mxu0 0.0
  %205 = vmatprep.subr.mxu0 0.0
  %206 = vmatpush2.msra.mxu0 0.0
  %207 = vmatprep.subr.mxu0 0.0
  %208 = vmatpush2.msra.mxu0 0.0
  %209 = vmatprep.subr.mxu0 0.0
  %210 = vmatpush2.msra.mxu0 0.0
  %211 = vmatprep.subr.mxu0 0.0
  %212 = vmatpush2.msra.mxu0 0.0
  %213 = vmatprep.subr.mxu0 0.0
  %214 = vmatpush2.msra.mxu0 0.0
  %215 = vmatprep.subr.mxu0 0.0
  %216 = vmatpush2.msra.mxu0 0.0
  %217 = vmatprep.subr.mxu0 0.0
  %218 = vmatpush2.msra.mxu0 0.0
  %219 = vmatprep.subr.mxu0 0.0
  %220 = vmatpush2.msra.mxu0 0.0
  %221 = vmatprep.subr.mxu0 0.0
  %222 = vmatpush2.msra.mxu0 0.0
  %223 = vmatprep.subr.mxu0 0.0
  %224 = vmatpush2.msra.mxu0 0.0
  %225 = vmatprep.subr.mxu0 0.0
  %226 = vmatpush2.msra.mxu0 0.0
  %227 = vmatprep.mubr.f32.mxu0 0.0
  %228 = vmatmul.mubr.f32.gmra.mxu0 %v161
  %v229 = vpop.f32.mrf.mxu0
  %v230 = vadd.f32 %v157, %v229
  %v231 = vpop.f32.mrf.mxu0
  %232 = vdwg.mxu0
  %233 = vst [vmem:[%s5] sm:$0x7] %v230
  // Predicated region
  $region22: #{linear_qnet_forward.1} parent=0 // pred_check
    _
  $region23: #{linear_qnet_forward.1} parent=0 // pred_check_branch
    %235 = sbr.rel (0) target = $region25
  $region24: #{linear_qnet_forward.1} parent=0 // pred_region
    _
  $region25: #{linear_qnet_forward.1} parent=0 // pred_fallthru
    _
  // Predicated region
  $region26: #{linear_qnet_forward.1} parent=0 // pred_check
    _
  $region27: #{linear_qnet_forward.1} parent=0 // pred_check_branch
    %237 = sbr.rel (0) target = $region29
  $region28: #{linear_qnet_forward.1} parent=0 // pred_region
    _
  $region29: #{linear_qnet_forward.1} parent=0 // pred_fallthru
    _

</llo_original>
